<compile_context>
chip_gen: v7x
topology: tpu7x:2x2x1
jax: 0.10.0
libtpu: 0.0.40
codegen_flags: <defaults>
</compile_context>

<pallas_src>
import jax
import jax.numpy as jnp
from jax import lax
from jax.experimental import pallas as pl
from jax.experimental.pallas import tpu as pltpu

IN_FEATURES = 16
OUT_FEATURES = 32


def linear_gelu_kernel(x_ref, wt_ref, b_ref, o_ref):
    # x_ref: (TB, 16), wt_ref: (16, 32) [pre-transposed], b_ref: (1, 32)
    v1 = jnp.dot(x_ref[...], wt_ref[...], preferred_element_type=jnp.float32)
    v1 = v1 + b_ref[...]
    # Exact-erf GELU, matching the PyTorch graph:
    #   v2 = v1 * 0.5 ; v3 = v1 / sqrt(2) ; v4 = erf(v3) ; v5 = v4 + 1 ; v6 = v2 * v5
    v2 = v1 * 0.5
    v3 = v1 * 0.7071067811865476
    v4 = lax.erf(v3)
    v5 = v4 + 1.0
    v6 = v2 * v5
    o_ref[...] = v6.astype(o_ref.dtype)


def linear_gelu(x, weight_t, bias2d, *, tb=512):
    """x: (B, 16), weight_t: (16, 32) [pre-transposed once], bias2d: (1, 32) -> (B, 32)."""
    B = x.shape[0]
    # Tile the batch; for small B the tile is the full array (no padding work).
    tb = min(tb, B)
    grid = (pl.cdiv(B, tb),)

    cost = pl.CostEstimate(
        flops=2 * B * IN_FEATURES * OUT_FEATURES,
        transcendentals=B * OUT_FEATURES,
        bytes_accessed=4 * (B * IN_FEATURES
                            + IN_FEATURES * OUT_FEATURES
                            + OUT_FEATURES
                            + B * OUT_FEATURES),
    )

    return pl.pallas_call(
        linear_gelu_kernel,
        out_shape=jax.ShapeDtypeStruct((B, OUT_FEATURES), x.dtype),
        grid=grid,
        in_specs=[
            pl.BlockSpec((tb, IN_FEATURES), lambda i: (i, 0)),            # x tile
            pl.BlockSpec((IN_FEATURES, OUT_FEATURES), lambda i: (0, 0)),  # weight^T (resident)
            pl.BlockSpec((1, OUT_FEATURES), lambda i: (0, 0)),            # bias (resident)
        ],
        out_specs=pl.BlockSpec((tb, OUT_FEATURES), lambda i: (i, 0)),
        compiler_params=pltpu.CompilerParams(
            dimension_semantics=("parallel",)),
        cost_estimate=cost,
    )(x, weight_t, bias2d)


def _reference(x, weight, bias):
    v1 = x @ weight.T + bias
    return (v1 * 0.5) * (lax.erf(v1 * 0.7071067811865476) + 1.0)


if __name__ == "__main__":
    key = jax.random.PRNGKey(0)
    kx, kw, kb, kx2 = jax.random.split(key, 4)

    # Deterministic inputs / parameters (synthetic init, PyTorch-like scale).
    x1 = jax.random.normal(kx, (1, IN_FEATURES), dtype=jnp.float32)
    bound = 1.0 / (IN_FEATURES ** 0.5)
    weight = jax.random.uniform(
        kw, (OUT_FEATURES, IN_FEATURES), dtype=jnp.float32,
        minval=-bound, maxval=bound)
    bias = jax.random.uniform(
        kb, (OUT_FEATURES,), dtype=jnp.float32, minval=-bound, maxval=bound)

    # One-time parameter prep (outside the per-call hot path).
    weight_t = jnp.asarray(weight.T)               # (16, 32)
    bias2d = bias.reshape(1, OUT_FEATURES)         # (1, 32)

    # 1) Module's spec shape: B = 1.
    out = linear_gelu(x1, weight_t, bias2d)
    out = jax.block_until_ready(out)
    ref = _reference(x1, weight, bias)
    assert jnp.allclose(out, ref, atol=1e-5, rtol=1e-5), "mismatch vs reference (B=1)"

    # 2) Exercise the gridded / pipelined path with a larger batch.
    xb = jax.random.normal(kx2, (1024, IN_FEATURES), dtype=jnp.float32)
    out_b = jax.block_until_ready(linear_gelu(xb, weight_t, bias2d))
    ref_b = _reference(xb, weight, bias)
    assert jnp.allclose(out_b, ref_b, atol=1e-5, rtol=1e-5), "mismatch vs reference (B=1024)"

    print("KERNEL_OK")
</pallas_src>

<mosaic_0001>
module attributes {stable_mosaic.version = 11 : i64} {
  func.func @linear_gelu_kernel(%arg0: i32, %arg1: memref<1x16xf32, #tpu.memory_space<vmem>>, %arg2: memref<16x32xf32, #tpu.memory_space<vmem>>, %arg3: memref<1x32xf32, #tpu.memory_space<vmem>>, %arg4: memref<1x32xf32, #tpu.memory_space<vmem>>) attributes {dimension_semantics = [#tpu.dimension_semantics<parallel>], iteration_bounds = array<i64: 1>, scalar_prefetch = 0 : i64, scratch_operands = 0 : i64, tpu.core_type = #tpu.core_type<tc>, window_params = [{transform_indices = @transform_0, window_bounds = array<i64: 1, 16>}, {pipeline_mode = #tpu.pipeline_mode<synchronous>, transform_indices = @transform_1, window_bounds = array<i64: 16, 32>}, {pipeline_mode = #tpu.pipeline_mode<synchronous>, transform_indices = @transform_2, window_bounds = array<i64: 1, 32>}, {transform_indices = @transform_3, window_bounds = array<i64: 1, 32>}]} {
    %c0 = arith.constant 0 : index
    %c0_0 = arith.constant 0 : index
    %0 = vector.load %arg1[%c0, %c0_0] : memref<1x16xf32, #tpu.memory_space<vmem>>, vector<1x16xf32>
    %c0_1 = arith.constant 0 : index
    %c0_2 = arith.constant 0 : index
    %1 = vector.load %arg2[%c0_1, %c0_2] : memref<16x32xf32, #tpu.memory_space<vmem>>, vector<16x32xf32>
    %cst = arith.constant dense<0.000000e+00> : vector<1x32xf32>
    %2 = tpu.matmul %0, %1, %cst {dimension_numbers = #tpu.dot_dimension_numbers<[1], [0], [0], [1], [0, 0, 1, 1], [], []>} : vector<1x16xf32>, vector<16x32xf32>, vector<1x32xf32> -> vector<1x32xf32>
    %c0_3 = arith.constant 0 : index
    %c0_4 = arith.constant 0 : index
    %3 = vector.load %arg3[%c0_3, %c0_4] : memref<1x32xf32, #tpu.memory_space<vmem>>, vector<1x32xf32>
    %4 = arith.addf %2, %3 : vector<1x32xf32>
    %cst_5 = arith.constant 5.000000e-01 : f32
    %5 = vector.broadcast %cst_5 : f32 to vector<1x32xf32>
    %6 = arith.mulf %4, %5 : vector<1x32xf32>
    %cst_6 = arith.constant 0.707106769 : f32
    %7 = vector.broadcast %cst_6 : f32 to vector<1x32xf32>
    %8 = arith.mulf %4, %7 : vector<1x32xf32>
    %9 = math.erf %8 : vector<1x32xf32>
    %cst_7 = arith.constant 1.000000e+00 : f32
    %10 = vector.broadcast %cst_7 : f32 to vector<1x32xf32>
    %11 = arith.addf %9, %10 : vector<1x32xf32>
    %12 = arith.mulf %6, %11 : vector<1x32xf32>
    %c0_8 = arith.constant 0 : index
    %c0_9 = arith.constant 0 : index
    %13 = vector.load %arg4[%c0_8, %c0_9] : memref<1x32xf32, #tpu.memory_space<vmem>>, vector<1x32xf32>
    tpu.vector_store %arg4[%c0_8, %c0_9], %12 {strides = array<i32>} : memref<1x32xf32, #tpu.memory_space<vmem>>, vector<1x32xf32>,
    return
  }
  func.func @transform_0(%arg0: i32) -> (i32, i32) {
    %c0_i32 = arith.constant 0 : i32
    %c0_i32_0 = arith.constant 0 : i32
    return %arg0, %c0_i32 : i32, i32
  }
  func.func @transform_1(%arg0: i32) -> (i32, i32) {
    %c0_i32 = arith.constant 0 : i32
    %c0_i32_0 = arith.constant 0 : i32
    %c0_i32_1 = arith.constant 0 : i32
    return %c0_i32, %c0_i32_0 : i32, i32
  }
  func.func @transform_2(%arg0: i32) -> (i32, i32) {
    %c0_i32 = arith.constant 0 : i32
    %c0_i32_0 = arith.constant 0 : i32
    %c0_i32_1 = arith.constant 0 : i32
    return %c0_i32, %c0_i32_0 : i32, i32
  }
  func.func @transform_3(%arg0: i32) -> (i32, i32) {
    %c0_i32 = arith.constant 0 : i32
    %c0_i32_0 = arith.constant 0 : i32
    return %arg0, %c0_i32 : i32, i32
  }
}

</mosaic_0001>

<llo_original>
// kernel: tpu_custom_call.1
$region0: #{tpu_custom_call.1}
  #allocation0 [shape = 'u32[]', space=smem, size = 0x4, offset = 0x4, fixed_abs, tag = 'smem constant byte address 0x4 - core index']
  #allocation1 [shape = 'u32[144,128]{1,0:T(1,128)}', space=vmem, size = 0x12000, scoped, tag = 'internal scratch']
  %s0 = inlined_call_operand.hbm [shape: f32[1,16], index: 0, kind: input, shape index: {}]
  %s1 = inlined_call_operand.hbm [shape: f32[16,32], index: 1, kind: input, shape index: {}]
  %s2 = inlined_call_operand.vmem [shape: f32[1,32], index: 2, kind: input, shape index: {}]
  %s3 = inlined_call_operand.hbm [shape: f32[1,32], index: 3, kind: output, shape index: {}]
  %s4 = sld [smem:[#allocation0]]
  $region30: #{tpu_custom_call.1} parent=0
    _
  %s6 = ssub.s32 1, %s4
  %s7 = scalar_select 0, %s6, %s4
  $region1: #{tpu_custom_call.1} parent=0
    #allocation2 [shape = 'u8[512]{0}', space=vmem, size = 0x400, scoped, tag = 'input window, operand 0, single buffered']
    #allocation3 [shape = 's32[1]{0}', space=sflag, size = 0x4, scoped, tag = 'scoped memory for tpu_custom_call.1']
    #allocation4 [shape = 's32[1]{0}', space=sflag, size = 0x4, scoped, tag = 'scoped memory for tpu_custom_call.1']
    #allocation5 [shape = 'u8[8192]{0}', space=vmem, size = 0x2000, scoped, tag = 'input window, operand 1, single buffered']
    #allocation6 [shape = 's32[1]{0}', space=sflag, size = 0x4, scoped, tag = 'scoped memory for tpu_custom_call.1']
    #allocation7 [shape = 'u8[512]{0}', space=vmem, size = 0x400, scoped, tag = 'output window, operand 0, single buffered']
    %8 = vsyncpa [#allocation3], 0
    %9 = vsyncpa [#allocation6], 0
    %10 = vsyncpa [#allocation4], 0
    // Predicated region
    $region2: #{tpu_custom_call.1} parent=1 // pred_check
      _
    $region3: #{tpu_custom_call.1} parent=1 // pred_check_branch
      %12 = sbr.rel (0) target = $region5
    $region4: #{tpu_custom_call.1} parent=1 // pred_region
      %s14 = ssub.s32 16, 16
      %15 = vsyncadd [#allocation3], %s14
      %s17 = sshll.u32 [#allocation2], 4
      %s18 = int_to_ptr.vmem [resolvable:$true] %s17
      %20 = dma.hbm_to_vmem [thread:$0]  %s0, 16, %s18, [#allocation3]
    $region5: #{tpu_custom_call.1} parent=1 // pred_fallthru
      _
    // Predicated region
    $region6: #{tpu_custom_call.1} parent=1 // pred_check
      _
    $region7: #{tpu_custom_call.1} parent=1 // pred_check_branch
      %22 = sbr.rel (0) target = $region9
    $region8: #{tpu_custom_call.1} parent=1 // pred_region
      %s24 = ssub.s32 256, 256
      %25 = vsyncadd [#allocation6], %s24
      %s26 = sshll.u32 [#allocation5], 4
      %s27 = int_to_ptr.vmem [resolvable:$true] %s26
      %32 = dma.hbm_to_vmem [thread:$0]  %s1, 256, %s27, [#allocation6], 128, 128, 8
    $region9: #{tpu_custom_call.1} parent=1 // pred_fallthru
      _
    // Predicated region
    $region10: #{tpu_custom_call.1} parent=1 // pred_check
      _
    $region11: #{tpu_custom_call.1} parent=1 // pred_check_branch
      %34 = sbr.rel (0) target = $region13
    $region12: #{tpu_custom_call.1} parent=1 // pred_region
      _
    $region13: #{tpu_custom_call.1} parent=1 // pred_fallthru
      _
    // Predicated region
    $region14: #{tpu_custom_call.1} parent=1 // pred_check
      _
    $region15: #{tpu_custom_call.1} parent=1 // pred_check_branch
      %36 = sbr.rel (0) target = $region17
    $region16: #{tpu_custom_call.1} parent=1 // pred_region
      %37 = dma.done [#allocation3], 16
    $region17: #{tpu_custom_call.1} parent=1 // pred_fallthru
      _
    // Predicated region
    $region18: #{tpu_custom_call.1} parent=1 // pred_check
      _
    $region19: #{tpu_custom_call.1} parent=1 // pred_check_branch
      %39 = sbr.rel (0) target = $region21
    $region20: #{tpu_custom_call.1} parent=1 // pred_region
      %40 = dma.done [#allocation6], 256
    $region21: #{tpu_custom_call.1} parent=1 // pred_fallthru
      _
    %v41 = vld [vmem:[#allocation2] sm:$0x1]
    %v42 = vld [vmem:[#allocation5] sm:$0xff]
    %v43 = vld [vmem:[#allocation5 + $0x8] sm:$0xff]
    %v44 = vld [vmem:[%s2] sm:$0x1]
    %vm45 = vcmask 130048
    %v47 = vsel %vm45, %v41, 0
    %49 = vmatprep.subr.mxu0 0.0
    %50 = vmatpush1.msra.mxu0 %v42
    %51 = vmatprep.subr.mxu0 0.0
    %52 = vmatpush1.msra.mxu0 %v43
    %53 = vmatprep.subr.mxu0 0.0
    %54 = vmatpush1.msra.mxu0 0.0
    %55 = vmatprep.subr.mxu0 0.0
    %56 = vmatpush1.msra.mxu0 0.0
    %57 = vmatprep.subr.mxu0 0.0
    %58 = vmatpush1.msra.mxu0 0.0
    %59 = vmatprep.subr.mxu0 0.0
    %60 = vmatpush1.msra.mxu0 0.0
    %61 = vmatprep.subr.mxu0 0.0
    %62 = vmatpush1.msra.mxu0 0.0
    %63 = vmatprep.subr.mxu0 0.0
    %64 = vmatpush1.msra.mxu0 0.0
    %65 = vmatprep.subr.mxu0 0.0
    %66 = vmatpush1.msra.mxu0 0.0
    %67 = vmatprep.subr.mxu0 0.0
    %68 = vmatpush1.msra.mxu0 0.0
    %69 = vmatprep.subr.mxu0 0.0
    %70 = vmatpush1.msra.mxu0 0.0
    %71 = vmatprep.subr.mxu0 0.0
    %72 = vmatpush1.msra.mxu0 0.0
    %73 = vmatprep.subr.mxu0 0.0
    %74 = vmatpush1.msra.mxu0 0.0
    %75 = vmatprep.subr.mxu0 0.0
    %76 = vmatpush1.msra.mxu0 0.0
    %77 = vmatprep.subr.mxu0 0.0
    %78 = vmatpush1.msra.mxu0 0.0
    %79 = vmatprep.subr.mxu0 0.0
    %80 = vmatpush1.msra.mxu0 0.0
    %81 = vmatprep.subr.mxu0 0.0
    %82 = vmatpush1.msra.mxu0 0.0
    %83 = vmatprep.subr.mxu0 0.0
    %84 = vmatpush1.msra.mxu0 0.0
    %85 = vmatprep.subr.mxu0 0.0
    %86 = vmatpush1.msra.mxu0 0.0
    %87 = vmatprep.subr.mxu0 0.0
    %88 = vmatpush1.msra.mxu0 0.0
    %89 = vmatprep.subr.mxu0 0.0
    %90 = vmatpush1.msra.mxu0 0.0
    %91 = vmatprep.subr.mxu0 0.0
    %92 = vmatpush1.msra.mxu0 0.0
    %93 = vmatprep.subr.mxu0 0.0
    %94 = vmatpush1.msra.mxu0 0.0
    %95 = vmatprep.subr.mxu0 0.0
    %96 = vmatpush1.msra.mxu0 0.0
    %97 = vmatprep.subr.mxu0 0.0
    %98 = vmatpush1.msra.mxu0 0.0
    %99 = vmatprep.subr.mxu0 0.0
    %100 = vmatpush1.msra.mxu0 0.0
    %101 = vmatprep.subr.mxu0 0.0
    %102 = vmatpush1.msra.mxu0 0.0
    %103 = vmatprep.subr.mxu0 0.0
    %104 = vmatpush1.msra.mxu0 0.0
    %105 = vmatprep.subr.mxu0 0.0
    %106 = vmatpush1.msra.mxu0 0.0
    %107 = vmatprep.subr.mxu0 0.0
    %108 = vmatpush1.msra.mxu0 0.0
    %109 = vmatprep.subr.mxu0 0.0
    %110 = vmatpush1.msra.mxu0 0.0
    %111 = vmatprep.subr.mxu0 0.0
    %112 = vmatpush1.msra.mxu0 0.0
    %113 = vmatprep.mubr.f32.mxu0 0.0
    %114 = vmatmul.mubr.f32.gmra.mrb[0].mxu0 %v47
    %v115 = vpop.f32.mrb[0].mxu0
    %v116 = vadd.f32 %v44, %v115
    %v117 = vpop.f32.mrb[0].mxu0
    %118 = vdwg.mxu0
    %v119 = vmul.f32 %v116, 0.5
    %v120 = vmul.f32 %v116, 0.70710677
    %v121 = verf.f32.pop %v120
    %v122 = vadd.f32 %v121, 1.0
    %v123 = vmul.f32 %v119, %v122
    %vm124 = vcmask 253952
    %125 = vst.msk [vmem:[#allocation7] sm:$0x1] %vm124, %v123
    // Predicated region
    $region22: #{tpu_custom_call.1} parent=1 // pred_check
      _
    $region23: #{tpu_custom_call.1} parent=1 // pred_check_branch
      %127 = sbr.rel (0) target = $region25
    $region24: #{tpu_custom_call.1} parent=1 // pred_region
      %s129 = ssub.s32 16, 16
      %130 = vsyncadd [#allocation4], %s129
      %s132 = sshll.u32 [#allocation7], 4
      %s133 = int_to_ptr.vmem [resolvable:$true] %s132
      %135 = dma.vmem_to_hbm [thread:$0]  %s133, 16, %s3, [#allocation4]
    $region25: #{tpu_custom_call.1} parent=1 // pred_fallthru
      _
    // Predicated region
    $region26: #{tpu_custom_call.1} parent=1 // pred_check
      _
    $region27: #{tpu_custom_call.1} parent=1 // pred_check_branch
      %137 = sbr.rel (0) target = $region29
    $region28: #{tpu_custom_call.1} parent=1 // pred_region
      %138 = dma.done [#allocation4], 16
    $region29: #{tpu_custom_call.1} parent=1 // pred_fallthru
      _
    %139 = vsyncpa [#allocation3], 1
    %140 = vsyncpa [#allocation6], 1
    %141 = vsyncpa [#allocation4], 1

</llo_original>
